<compile_context>
chip_gen: v6e
topology: v6e:2x2x1
jax: 0.10.0
libtpu: 0.0.40
codegen_flags: <defaults>
</compile_context>

<pallas_src>
import math

import jax
import jax.numpy as jnp
from jax.experimental import pallas as pl
from jax.experimental.pallas import tpu as pltpu

EPS = 1e-6                # F.pairwise_distance default eps (added to the difference)
_OUT_LANE = 128           # lane padding of a (rows, 1) f32 VMEM block
_MAX_BLOCK_ROWS = 32 * 1024


def _round_up(x, m):
    return (x + m - 1) // m * m


def _pick_vmem_limit_bytes():
    """Per-generation scoped-VMEM limit (v7x: 64 MiB/TC, v5e/v6e: 128 MiB)."""
    cap = 0
    try:
        cap = int(getattr(pltpu.get_tpu_info(), "vmem_capacity_bytes", 0) or 0)
    except Exception:
        cap = 0
    if cap <= 0:
        cap = 64 * 1024 * 1024            # conservative default (v7x per-TC VMEM)
    # ~5/8 of physical: ~40 MiB on v7x, ~80 MiB on v5e/v6e.
    return min((cap * 5) // 8, 96 * 1024 * 1024)


def _pick_block_rows(n, feat, itemsize, sub, vmem_limit):
    """Largest sublane-aligned row tile whose real VMEM footprint fits the budget."""
    budget = (vmem_limit * 3) // 4        # headroom for Mosaic-internal scratch/spills
    per_row = (
        2 * 2 * feat * itemsize           # 2 inputs x 2 pipeline buffers (wire dtype)
        + 4 * feat * 4                    # ~4 f32 tile copies: cast/diff/eps/square temps
        + 4 * _OUT_LANE * 4               # lane-padded (rows,1): out x2 bufs + reduce/sqrt temps
    )
    block = budget // per_row
    block = min(block, _MAX_BLOCK_ROWS, _round_up(n, sub))
    return max(sub, (block // sub) * sub)


def _pairwise_distance_kernel(o1_ref, o2_ref, d_ref):
    # Upcast to f32 inside the kernel only (inputs stay in their wire dtype in HBM).
    # Cast-then-subtract keeps the f32-reference numerics for narrow wire dtypes.
    diff = o1_ref[...].astype(jnp.float32) - o2_ref[...].astype(jnp.float32) + EPS
    d_ref[...] = jnp.sqrt(jnp.sum(diff * diff, axis=-1, keepdims=True))


def pairwise_distance(output1, output2, *, block_rows=None):
    """F.pairwise_distance(output1, output2) for 2-D (N, D) inputs. Returns (N,) f32."""
    assert output1.ndim == 2 and output1.shape == output2.shape
    n, feat = output1.shape
    itemsize = jnp.dtype(output1.dtype).itemsize
    # Sublane alignment for the input dtype (f32: 8, bf16: 16, 8-bit: 32).
    sub = max(8, 32 // itemsize)

    vmem_limit = _pick_vmem_limit_bytes()
    if block_rows is None:
        block_rows = _pick_block_rows(n, feat, itemsize, sub, vmem_limit)
    else:
        block_rows = max(sub, _round_up(block_rows, sub))

    grid = (pl.cdiv(n, block_rows),)      # ragged last tile allowed: boundary DMAs clip
    row_map = lambda i: (i, 0)

    dist = pl.pallas_call(
        _pairwise_distance_kernel,
        out_shape=jax.ShapeDtypeStruct((n, 1), jnp.float32),
        grid_spec=pltpu.PrefetchScalarGridSpec(
            num_scalar_prefetch=0,
            grid=grid,
            in_specs=[
                pl.BlockSpec((block_rows, feat), row_map),
                pl.BlockSpec((block_rows, feat), row_map),
            ],
            out_specs=pl.BlockSpec((block_rows, 1), row_map),
        ),
        compiler_params=pltpu.CompilerParams(
            dimension_semantics=("parallel",),
            vmem_limit_bytes=vmem_limit,
        ),
        cost_estimate=pl.CostEstimate(
            flops=3 * n * feat,
            transcendentals=n,
            bytes_accessed=2 * n * feat * itemsize + n * 4,
        ),
    )(output1, output2)
    return dist[:, 0]


def contrastive_loss(output1, output2, label, *, margin=2.0, block_rows=None):
    """output1, output2: (N, D) any float dtype; label: (N,). Returns scalar f32."""
    n = output1.shape[0]
    d = pairwise_distance(output1, output2, block_rows=block_rows)   # (N,) f32
    lab = label.astype(jnp.float32).reshape(n)

    # Lane-dense O(N) epilogue in XLA (per perf review).
    # log(p) = log(1 + e^-margin) - softplus(d - margin)   [exact, overflow-safe]
    log_num = math.log1p(math.exp(-margin))
    x = d - margin
    softplus = jnp.maximum(x, 0.0) + jnp.log1p(jnp.exp(-jnp.abs(x)))
    log_p = log_num - softplus
    p = jnp.exp(log_p)
    # log(1 - p) kept in the naive form to match the PyTorch reference exactly
    # (including its -inf/NaN behavior when d -> 0, p -> 1 on label == 0 rows).
    term = lab * log_p + (1.0 - lab) * jnp.log(1.0 - p)
    return -jnp.mean(term)


def _reference_loss(output1, output2, label, margin=2.0):
    # Pure-JAX reference mirroring the PyTorch module (for sanity checking).
    o1 = output1.astype(jnp.float32)
    o2 = output2.astype(jnp.float32)
    lab = label.astype(jnp.float32)
    diff = o1 - o2 + EPS
    dist = jnp.sqrt(jnp.sum(diff * diff, axis=-1))
    p = (1.0 + math.exp(-margin)) / (1.0 + jnp.exp(dist - margin))
    return -jnp.mean(lab * jnp.log(p) + (1.0 - lab) * jnp.log(1.0 - p))


if __name__ == "__main__":
    key = jax.random.PRNGKey(0)
    k1, k2, k3, k4, k5, k6, k7 = jax.random.split(key, 7)

    # Test 1: f32 inputs, small aligned batch.
    N, D = 8, 32
    o1 = jax.random.normal(k1, (N, D), dtype=jnp.float32)
    o2 = jax.random.normal(k2, (N, D), dtype=jnp.float32)
    lab = jax.random.bernoulli(k3, 0.5, (N,)).astype(jnp.float32)
    loss = contrastive_loss(o1, o2, lab)
    jax.block_until_ready(loss)
    ref = _reference_loss(o1, o2, lab)
    assert jnp.allclose(loss, ref, rtol=1e-5, atol=1e-5), (loss, ref)

    # Test 2: bf16 inputs on the wire (no wrapper cast), ragged unaligned batch.
    N2, D2 = 13, 128
    o1b = jax.random.normal(k4, (N2, D2), dtype=jnp.bfloat16)
    o2b = jax.random.normal(k5, (N2, D2), dtype=jnp.bfloat16)
    labb = jax.random.bernoulli(k3, 0.5, (N2,)).astype(jnp.float32)
    loss_b = contrastive_loss(o1b, o2b, labb)
    jax.block_until_ready(loss_b)
    ref_b = _reference_loss(o1b, o2b, labb)
    assert jnp.allclose(loss_b, ref_b, rtol=1e-4, atol=1e-4), (loss_b, ref_b)

    # Test 3: multi-tile grid with a ragged last tile (forced small block_rows),
    # exercising the no-pad / clipped-boundary-DMA path.
    N3, D3 = 300, 64
    o1c = jax.random.normal(k6, (N3, D3), dtype=jnp.float32)
    o2c = jax.random.normal(k7, (N3, D3), dtype=jnp.float32)
    labc = jax.random.bernoulli(k3, 0.5, (N3,)).astype(jnp.float32)
    loss_c = contrastive_loss(o1c, o2c, labc, block_rows=128)
    jax.block_until_ready(loss_c)
    ref_c = _reference_loss(o1c, o2c, labc)
    assert jnp.allclose(loss_c, ref_c, rtol=1e-5, atol=1e-5), (loss_c, ref_c)

    print("KERNEL_OK")
</pallas_src>

<mosaic_0001>
module attributes {stable_mosaic.version = 11 : i64} {
  func.func @_pairwise_distance_kernel(%arg0: i32, %arg1: memref<8x32xf32, #tpu.memory_space<vmem>>, %arg2: memref<8x32xf32, #tpu.memory_space<vmem>>, %arg3: memref<8x1xf32, #tpu.memory_space<vmem>>) attributes {dimension_semantics = [#tpu.dimension_semantics<parallel>], iteration_bounds = array<i64: 1>, scalar_prefetch = 0 : i64, scratch_operands = 0 : i64, tpu.core_type = #tpu.core_type<tc>, window_params = [{transform_indices = @transform_0, window_bounds = array<i64: 8, 32>}, {transform_indices = @transform_1, window_bounds = array<i64: 8, 32>}, {transform_indices = @transform_2, window_bounds = array<i64: 8, 1>}]} {
    %c0 = arith.constant 0 : index
    %c0_0 = arith.constant 0 : index
    %0 = vector.load %arg1[%c0, %c0_0] : memref<8x32xf32, #tpu.memory_space<vmem>>, vector<8x32xf32>
    %c0_1 = arith.constant 0 : index
    %c0_2 = arith.constant 0 : index
    %1 = vector.load %arg2[%c0_1, %c0_2] : memref<8x32xf32, #tpu.memory_space<vmem>>, vector<8x32xf32>
    %2 = arith.subf %0, %1 : vector<8x32xf32>
    %cst = arith.constant 9.99999997E-7 : f32
    %3 = vector.broadcast %cst : f32 to vector<8x32xf32>
    %4 = arith.addf %2, %3 : vector<8x32xf32>
    %5 = arith.mulf %4, %4 : vector<8x32xf32>
    %cst_3 = arith.constant dense<0.000000e+00> : vector<8xf32>
    %6 = vector.multi_reduction <add>, %5, %cst_3 [1] : vector<8x32xf32> to vector<8xf32>
    %7 = vector.shape_cast %6 : vector<8xf32> to vector<8x1xf32>
    %8 = math.sqrt %7 : vector<8x1xf32>
    %c0_4 = arith.constant 0 : index
    %c0_5 = arith.constant 0 : index
    %9 = vector.load %arg3[%c0_4, %c0_5] : memref<8x1xf32, #tpu.memory_space<vmem>>, vector<8x1xf32>
    tpu.vector_store %arg3[%c0_4, %c0_5], %8 {strides = array<i32>} : memref<8x1xf32, #tpu.memory_space<vmem>>, vector<8x1xf32>,
    return
  }
  func.func @transform_0(%arg0: i32) -> (i32, i32) {
    %c0_i32 = arith.constant 0 : i32
    %c0_i32_0 = arith.constant 0 : i32
    return %arg0, %c0_i32 : i32, i32
  }
  func.func @transform_1(%arg0: i32) -> (i32, i32) {
    %c0_i32 = arith.constant 0 : i32
    %c0_i32_0 = arith.constant 0 : i32
    return %arg0, %c0_i32 : i32, i32
  }
  func.func @transform_2(%arg0: i32) -> (i32, i32) {
    %c0_i32 = arith.constant 0 : i32
    %c0_i32_0 = arith.constant 0 : i32
    return %arg0, %c0_i32 : i32, i32
  }
}

</mosaic_0001>

<llo_original>
// kernel: tpu_custom_call.1
$region0: #{tpu_custom_call.1}
  #allocation0 [shape = 'u32[]', space=smem, size = 0x4, offset = 0x4, fixed_abs, tag = 'smem constant byte address 0x4 - core index']
  #allocation1 [shape = 'u32[144,128]{1,0:T(1,128)}', space=vmem, size = 0x12000, scoped, tag = 'internal scratch']
  %s0 = inlined_call_operand.hbm [shape: f32[8,32], index: 0, kind: input, shape index: {}]
  %s1 = inlined_call_operand.hbm [shape: f32[8,32], index: 1, kind: input, shape index: {}]
  %s2 = inlined_call_operand.vmem [shape: f32[8,1], index: 2, kind: output, shape index: {}]
  %s3 = sld [smem:[#allocation0]]
  $region26: #{tpu_custom_call.1} parent=0
    _
  %s5 = ssub.s32 1, %s3
  %s6 = scalar_select 0, %s5, %s3
  $region1: #{tpu_custom_call.1} parent=0
    #allocation2 [shape = 'u8[4096]{0}', space=vmem, size = 0x1000, scoped, tag = 'input window, operand 0, single buffered']
    #allocation3 [shape = 's32[1]{0}', space=sflag, size = 0x4, scoped, tag = 'scoped memory for tpu_custom_call.1']
    #allocation4 [shape = 'u8[4096]{0}', space=vmem, size = 0x1000, scoped, tag = 'input window, operand 1, single buffered']
    #allocation5 [shape = 's32[1]{0}', space=sflag, size = 0x4, scoped, tag = 'scoped memory for tpu_custom_call.1']
    %7 = vsyncpa [#allocation3], 0
    %8 = vsyncpa [#allocation5], 0
    // Predicated region
    $region2: #{tpu_custom_call.1} parent=1 // pred_check
      _
    $region3: #{tpu_custom_call.1} parent=1 // pred_check_branch
      %10 = sbr.rel (0) target = $region5
    $region4: #{tpu_custom_call.1} parent=1 // pred_region
      %s12 = ssub.s32 128, 128
      %13 = vsyncadd [#allocation3], %s12
      %s15 = sshll.u32 [#allocation2], 4
      %s16 = int_to_ptr.vmem [resolvable:$true] %s15
      %18 = dma.hbm_to_vmem [thread:$0]  %s0, 128, %s16, [#allocation3]
    $region5: #{tpu_custom_call.1} parent=1 // pred_fallthru
      _
    // Predicated region
    $region6: #{tpu_custom_call.1} parent=1 // pred_check
      _
    $region7: #{tpu_custom_call.1} parent=1 // pred_check_branch
      %20 = sbr.rel (0) target = $region9
    $region8: #{tpu_custom_call.1} parent=1 // pred_region
      %s22 = ssub.s32 128, 128
      %23 = vsyncadd [#allocation5], %s22
      %s25 = sshll.u32 [#allocation4], 4
      %s26 = int_to_ptr.vmem [resolvable:$true] %s25
      %28 = dma.hbm_to_vmem [thread:$0]  %s1, 128, %s26, [#allocation5]
    $region9: #{tpu_custom_call.1} parent=1 // pred_fallthru
      _
    // Predicated region
    $region10: #{tpu_custom_call.1} parent=1 // pred_check
      _
    $region11: #{tpu_custom_call.1} parent=1 // pred_check_branch
      %30 = sbr.rel (0) target = $region13
    $region12: #{tpu_custom_call.1} parent=1 // pred_region
      %31 = dma.done [#allocation3], 128
    $region13: #{tpu_custom_call.1} parent=1 // pred_fallthru
      _
    // Predicated region
    $region14: #{tpu_custom_call.1} parent=1 // pred_check
      _
    $region15: #{tpu_custom_call.1} parent=1 // pred_check_branch
      %33 = sbr.rel (0) target = $region17
    $region16: #{tpu_custom_call.1} parent=1 // pred_region
      %34 = dma.done [#allocation5], 128
    $region17: #{tpu_custom_call.1} parent=1 // pred_fallthru
      _
    %v35 = vld [vmem:[#allocation2] sm:$0xff]
    %v36 = vld [vmem:[#allocation4] sm:$0xff]
    %v37 = vsub.f32 %v35, %v36
    %v38 = vadd.f32 %v37, 1e-06
    %v39 = vmul.f32 %v38, %v38
    %vm40 = vcmask 261120
    %v41 = vsel %vm40, %v39, 0.0
    %42 = vadd.xlane.f32.xlu0 %v41
    %v43 = vpop.xlane.xlu0 %42
    %v44 = vrsqrt.pop %v43
    %v45 = vmul.f32 %v43, %v44
    %vm46 = vcmp.eq.f32.partialorder %v43, inf
    %v47 = vsel %vm46, %v43, %v45
    %vm48 = vcmp.eq.f32.partialorder %v43, 0.0
    %v49 = vand.u32 %v43, 2147483648
    %v50 = vsel %vm48, %v49, %v47
    %vm51 = vcmask 7168
    %52 = vst.msk [vmem:[%s2] sm:$0xff] %vm51, %v50
    // Predicated region
    $region18: #{tpu_custom_call.1} parent=1 // pred_check
      _
    $region19: #{tpu_custom_call.1} parent=1 // pred_check_branch
      %54 = sbr.rel (0) target = $region21
    $region20: #{tpu_custom_call.1} parent=1 // pred_region
      _
    $region21: #{tpu_custom_call.1} parent=1 // pred_fallthru
      _
    // Predicated region
    $region22: #{tpu_custom_call.1} parent=1 // pred_check
      _
    $region23: #{tpu_custom_call.1} parent=1 // pred_check_branch
      %56 = sbr.rel (0) target = $region25
    $region24: #{tpu_custom_call.1} parent=1 // pred_region
      _
    $region25: #{tpu_custom_call.1} parent=1 // pred_fallthru
      _
    %57 = vsyncpa [#allocation3], 1
    %58 = vsyncpa [#allocation5], 1

</llo_original>
